<compile_context>
chip_gen: v5e
topology: v5e:2x2
jax: 0.10.0
libtpu: 0.0.40
codegen_flags: <defaults>
</compile_context>

<pallas_src>
import functools

import jax
import jax.numpy as jnp
from jax.experimental import pallas as pl
from jax.experimental.pallas import tpu as pltpu


def _time_translate_kernel(shift_ref, x_ref, o_ref, *, rows_per_block, seq_len):
    # shift_ref: SMEM (G*BB,) int32 per-batch shifts (scalar-prefetched)
    # x_ref:     VMEM (BB, C, T) unpadded waveforms, time on the lane axis
    # o_ref:     VMEM (BB, C, T)
    g = pl.program_id(0)
    n_ch = x_ref.shape[1]
    # Hoisted once per grid step (JAX does not CSE broadcast_in_dim inside loops).
    t_idx = jax.lax.broadcasted_iota(jnp.int32, (n_ch, seq_len), 1)

    for i in range(rows_per_block):  # static unrolled loop over rows in this block
        s = shift_ref[g * rows_per_block + i]          # int32 in [-pad, pad]
        amt = jnp.mod(-s, seq_len)                     # non-negative roll amount
        # pltpu.roll == jnp.roll: rolled[t] = x[(t - amt) % T] = x[(t + s) % T]
        rolled = pltpu.roll(x_ref[i], amt, 1)
        src = t_idx + s                                # source index t + shift
        valid = (src >= 0) & (src < seq_len)
        o_ref[i] = jnp.where(valid, rolled, 0.0).astype(o_ref.dtype)


def time_translate(waveforms, key, *, jitter, sample_rate, rows_per_block=8):
    """Pallas implementation of TimeTranslator.forward.

    waveforms: (B, C, T) float array (same axis convention as the PyTorch module).
    Returns (shifted_waveforms, shifts).
    """
    B, C, T = waveforms.shape

    # torch.rand -> affine -> * sample_rate -> .long()  (int cast truncates toward zero)
    u = jax.random.uniform(key, (B,), dtype=jnp.float32)
    shifts_f = (2.0 * jitter * u - jitter) * sample_rate
    shifts = shifts_f.astype(jnp.int32)

    bb = min(rows_per_block, B)
    g = pl.cdiv(B, bb)
    # Pad the tiny scalar shift table so in-kernel SMEM reads never index past it
    # (boundary output rows beyond B are discarded by Pallas on writeback).
    shifts_padded = jnp.pad(shifts, (0, g * bb - B))

    kernel = functools.partial(_time_translate_kernel, rows_per_block=bb, seq_len=T)
    out = pl.pallas_call(
        kernel,
        out_shape=jax.ShapeDtypeStruct((B, C, T), waveforms.dtype),
        grid_spec=pltpu.PrefetchScalarGridSpec(
            num_scalar_prefetch=1,
            grid=(g,),
            in_specs=[pl.BlockSpec((bb, C, T), lambda i, shifts: (i, 0, 0))],
            out_specs=pl.BlockSpec((bb, C, T), lambda i, shifts: (i, 0, 0)),
        ),
        compiler_params=pltpu.CompilerParams(dimension_semantics=("parallel",)),
    )(shifts_padded, waveforms)

    return out, shifts


def _reference(waveforms, shifts, pad):
    """Pure-JAX mirror of the PyTorch pad+gather, for correctness checking."""
    B, C, T = waveforms.shape
    idx = jnp.arange(T)[None, None, :] + pad + shifts[:, None, None]
    xp = jnp.pad(waveforms, ((0, 0), (0, 0), (pad, pad)))
    return jnp.take_along_axis(xp, jnp.broadcast_to(idx, (B, C, T)), axis=2)


if __name__ == "__main__":
    jitter = 0.02
    sample_rate = 400.0          # -> pad = int(0.02 * 400) = 8
    B, C, T = 4, 2, 256

    key = jax.random.PRNGKey(0)
    k_data, k_shift = jax.random.split(key)
    waveforms = jax.random.normal(k_data, (B, C, T), dtype=jnp.float32)

    out, shifts = time_translate(waveforms, k_shift, jitter=jitter, sample_rate=sample_rate)
    out = jax.block_until_ready(out)

    ref = _reference(waveforms, shifts, int(jitter * sample_rate))
    assert out.shape == (B, C, T)
    assert jnp.allclose(out, ref), "Pallas output does not match reference gather"

    print("KERNEL_OK")
</pallas_src>

<mosaic_0001>
module attributes {stable_mosaic.version = 11 : i64} {
  func.func @_time_translate_kernel(%arg0: i32, %arg1: memref<4xi32, #tpu.memory_space<smem>>, %arg2: memref<4x2x256xf32, #tpu.memory_space<vmem>>, %arg3: memref<4x2x256xf32, #tpu.memory_space<vmem>>) attributes {dimension_semantics = [#tpu.dimension_semantics<parallel>], iteration_bounds = array<i64: 1>, scalar_prefetch = 1 : i64, scratch_operands = 0 : i64, tpu.core_type = #tpu.core_type<tc>, window_params = [{transform_indices = @transform_0, window_bounds = array<i64: 4, 2, 256>}, {transform_indices = @transform_1, window_bounds = array<i64: 4, 2, 256>}]} {
    %0 = tpu.iota {dimensions = array<i32: 1>} : vector<2x256xi32>
    %c4_i32 = arith.constant 4 : i32
    %1 = arith.muli %arg0, %c4_i32 : i32
    %c0_i32 = arith.constant 0 : i32
    %2 = arith.addi %1, %c0_i32 : i32
    %3 = arith.index_cast %2 : i32 to index
    %4 = memref.load %arg1[%3] : memref<4xi32, #tpu.memory_space<smem>>
    %c0_i32_0 = arith.constant 0 : i32
    %5 = arith.subi %c0_i32_0, %4 : i32
    %c256_i32 = arith.constant 256 : i32
    %c0_i32_1 = arith.constant 0 : i32
    %6 = arith.cmpi eq, %c256_i32, %c0_i32_1 : i32
    %c1_i32 = arith.constant 1 : i32
    %7 = arith.select %6, %c1_i32, %c256_i32 : i32
    %8 = arith.remsi %5, %7 : i32
    %c0_i32_2 = arith.constant 0 : i32
    %9 = arith.cmpi ne, %8, %c0_i32_2 : i32
    %c0_i32_3 = arith.constant 0 : i32
    %10 = arith.cmpi slt, %8, %c0_i32_3 : i32
    %c0_i32_4 = arith.constant 0 : i32
    %11 = arith.cmpi slt, %7, %c0_i32_4 : i32
    %12 = arith.xori %10, %11 : i1
    %13 = arith.andi %12, %9 : i1
    %14 = arith.addi %8, %7 : i32
    %15 = arith.select %13, %14, %8 : i32
    %c0 = arith.constant 0 : index
    %c0_5 = arith.constant 0 : index
    %c0_6 = arith.constant 0 : index
    %16 = vector.load %arg2[%c0, %c0_5, %c0_6] : memref<4x2x256xf32, #tpu.memory_space<vmem>>, vector<1x2x256xf32>
    %17 = vector.shape_cast %16 : vector<1x2x256xf32> to vector<2x256xf32>
    %18 = tpu.dynamic_rotate %17 by %15 dim 1 : vector<2x256xf32>, i32 -> vector<2x256xf32>
    %19 = vector.broadcast %4 : i32 to vector<2x256xi32>
    %20 = arith.addi %0, %19 : vector<2x256xi32>
    %c0_i32_7 = arith.constant 0 : i32
    %21 = vector.broadcast %c0_i32_7 : i32 to vector<2x256xi32>
    %22 = arith.cmpi sge, %20, %21 : vector<2x256xi32>
    %c256_i32_8 = arith.constant 256 : i32
    %23 = vector.broadcast %c256_i32_8 : i32 to vector<2x256xi32>
    %24 = arith.cmpi slt, %20, %23 : vector<2x256xi32>
    %25 = arith.andi %22, %24 : vector<2x256xi1>
    %cst = arith.constant 0.000000e+00 : f32
    %26 = vector.broadcast %cst : f32 to vector<2x256xf32>
    %27 = arith.select %25, %18, %26 : vector<2x256xi1>, vector<2x256xf32>
    %c0_9 = arith.constant 0 : index
    %c0_10 = arith.constant 0 : index
    %c0_11 = arith.constant 0 : index
    %28 = vector.load %arg3[%c0_9, %c0_10, %c0_11] : memref<4x2x256xf32, #tpu.memory_space<vmem>>, vector<1x2x256xf32>
    %29 = vector.shape_cast %28 : vector<1x2x256xf32> to vector<2x256xf32>
    %30 = vector.shape_cast %27 : vector<2x256xf32> to vector<1x2x256xf32>
    tpu.vector_store %arg3[%c0_9, %c0_10, %c0_11], %30 {strides = array<i32>} : memref<4x2x256xf32, #tpu.memory_space<vmem>>, vector<1x2x256xf32>,
    %c4_i32_12 = arith.constant 4 : i32
    %31 = arith.muli %arg0, %c4_i32_12 : i32
    %c1_i32_13 = arith.constant 1 : i32
    %32 = arith.addi %31, %c1_i32_13 : i32
    %33 = arith.index_cast %32 : i32 to index
    %34 = memref.load %arg1[%33] : memref<4xi32, #tpu.memory_space<smem>>
    %c0_i32_14 = arith.constant 0 : i32
    %35 = arith.subi %c0_i32_14, %34 : i32
    %c256_i32_15 = arith.constant 256 : i32
    %c0_i32_16 = arith.constant 0 : i32
    %36 = arith.cmpi eq, %c256_i32_15, %c0_i32_16 : i32
    %c1_i32_17 = arith.constant 1 : i32
    %37 = arith.select %36, %c1_i32_17, %c256_i32_15 : i32
    %38 = arith.remsi %35, %37 : i32
    %c0_i32_18 = arith.constant 0 : i32
    %39 = arith.cmpi ne, %38, %c0_i32_18 : i32
    %c0_i32_19 = arith.constant 0 : i32
    %40 = arith.cmpi slt, %38, %c0_i32_19 : i32
    %c0_i32_20 = arith.constant 0 : i32
    %41 = arith.cmpi slt, %37, %c0_i32_20 : i32
    %42 = arith.xori %40, %41 : i1
    %43 = arith.andi %42, %39 : i1
    %44 = arith.addi %38, %37 : i32
    %45 = arith.select %43, %44, %38 : i32
    %c1 = arith.constant 1 : index
    %c0_21 = arith.constant 0 : index
    %c0_22 = arith.constant 0 : index
    %46 = vector.load %arg2[%c1, %c0_21, %c0_22] : memref<4x2x256xf32, #tpu.memory_space<vmem>>, vector<1x2x256xf32>
    %47 = vector.shape_cast %46 : vector<1x2x256xf32> to vector<2x256xf32>
    %48 = tpu.dynamic_rotate %47 by %45 dim 1 : vector<2x256xf32>, i32 -> vector<2x256xf32>
    %49 = vector.broadcast %34 : i32 to vector<2x256xi32>
    %50 = arith.addi %0, %49 : vector<2x256xi32>
    %c0_i32_23 = arith.constant 0 : i32
    %51 = vector.broadcast %c0_i32_23 : i32 to vector<2x256xi32>
    %52 = arith.cmpi sge, %50, %51 : vector<2x256xi32>
    %c256_i32_24 = arith.constant 256 : i32
    %53 = vector.broadcast %c256_i32_24 : i32 to vector<2x256xi32>
    %54 = arith.cmpi slt, %50, %53 : vector<2x256xi32>
    %55 = arith.andi %52, %54 : vector<2x256xi1>
    %cst_25 = arith.constant 0.000000e+00 : f32
    %56 = vector.broadcast %cst_25 : f32 to vector<2x256xf32>
    %57 = arith.select %55, %48, %56 : vector<2x256xi1>, vector<2x256xf32>
    %c1_26 = arith.constant 1 : index
    %c0_27 = arith.constant 0 : index
    %c0_28 = arith.constant 0 : index
    %58 = vector.load %arg3[%c1_26, %c0_27, %c0_28] : memref<4x2x256xf32, #tpu.memory_space<vmem>>, vector<1x2x256xf32>
    %59 = vector.shape_cast %58 : vector<1x2x256xf32> to vector<2x256xf32>
    %60 = vector.shape_cast %57 : vector<2x256xf32> to vector<1x2x256xf32>
    tpu.vector_store %arg3[%c1_26, %c0_27, %c0_28], %60 {strides = array<i32>} : memref<4x2x256xf32, #tpu.memory_space<vmem>>, vector<1x2x256xf32>,
    %c4_i32_29 = arith.constant 4 : i32
    %61 = arith.muli %arg0, %c4_i32_29 : i32
    %c2_i32 = arith.constant 2 : i32
    %62 = arith.addi %61, %c2_i32 : i32
    %63 = arith.index_cast %62 : i32 to index
    %64 = memref.load %arg1[%63] : memref<4xi32, #tpu.memory_space<smem>>
    %c0_i32_30 = arith.constant 0 : i32
    %65 = arith.subi %c0_i32_30, %64 : i32
    %c256_i32_31 = arith.constant 256 : i32
    %c0_i32_32 = arith.constant 0 : i32
    %66 = arith.cmpi eq, %c256_i32_31, %c0_i32_32 : i32
    %c1_i32_33 = arith.constant 1 : i32
    %67 = arith.select %66, %c1_i32_33, %c256_i32_31 : i32
    %68 = arith.remsi %65, %67 : i32
    %c0_i32_34 = arith.constant 0 : i32
    %69 = arith.cmpi ne, %68, %c0_i32_34 : i32
    %c0_i32_35 = arith.constant 0 : i32
    %70 = arith.cmpi slt, %68, %c0_i32_35 : i32
    %c0_i32_36 = arith.constant 0 : i32
    %71 = arith.cmpi slt, %67, %c0_i32_36 : i32
    %72 = arith.xori %70, %71 : i1
    %73 = arith.andi %72, %69 : i1
    %74 = arith.addi %68, %67 : i32
    %75 = arith.select %73, %74, %68 : i32
    %c2 = arith.constant 2 : index
    %c0_37 = arith.constant 0 : index
    %c0_38 = arith.constant 0 : index
    %76 = vector.load %arg2[%c2, %c0_37, %c0_38] : memref<4x2x256xf32, #tpu.memory_space<vmem>>, vector<1x2x256xf32>
    %77 = vector.shape_cast %76 : vector<1x2x256xf32> to vector<2x256xf32>
    %78 = tpu.dynamic_rotate %77 by %75 dim 1 : vector<2x256xf32>, i32 -> vector<2x256xf32>
    %79 = vector.broadcast %64 : i32 to vector<2x256xi32>
    %80 = arith.addi %0, %79 : vector<2x256xi32>
    %c0_i32_39 = arith.constant 0 : i32
    %81 = vector.broadcast %c0_i32_39 : i32 to vector<2x256xi32>
    %82 = arith.cmpi sge, %80, %81 : vector<2x256xi32>
    %c256_i32_40 = arith.constant 256 : i32
    %83 = vector.broadcast %c256_i32_40 : i32 to vector<2x256xi32>
    %84 = arith.cmpi slt, %80, %83 : vector<2x256xi32>
    %85 = arith.andi %82, %84 : vector<2x256xi1>
    %cst_41 = arith.constant 0.000000e+00 : f32
    %86 = vector.broadcast %cst_41 : f32 to vector<2x256xf32>
    %87 = arith.select %85, %78, %86 : vector<2x256xi1>, vector<2x256xf32>
    %c2_42 = arith.constant 2 : index
    %c0_43 = arith.constant 0 : index
    %c0_44 = arith.constant 0 : index
    %88 = vector.load %arg3[%c2_42, %c0_43, %c0_44] : memref<4x2x256xf32, #tpu.memory_space<vmem>>, vector<1x2x256xf32>
    %89 = vector.shape_cast %88 : vector<1x2x256xf32> to vector<2x256xf32>
    %90 = vector.shape_cast %87 : vector<2x256xf32> to vector<1x2x256xf32>
    tpu.vector_store %arg3[%c2_42, %c0_43, %c0_44], %90 {strides = array<i32>} : memref<4x2x256xf32, #tpu.memory_space<vmem>>, vector<1x2x256xf32>,
    %c4_i32_45 = arith.constant 4 : i32
    %91 = arith.muli %arg0, %c4_i32_45 : i32
    %c3_i32 = arith.constant 3 : i32
    %92 = arith.addi %91, %c3_i32 : i32
    %93 = arith.index_cast %92 : i32 to index
    %94 = memref.load %arg1[%93] : memref<4xi32, #tpu.memory_space<smem>>
    %c0_i32_46 = arith.constant 0 : i32
    %95 = arith.subi %c0_i32_46, %94 : i32
    %c256_i32_47 = arith.constant 256 : i32
    %c0_i32_48 = arith.constant 0 : i32
    %96 = arith.cmpi eq, %c256_i32_47, %c0_i32_48 : i32
    %c1_i32_49 = arith.constant 1 : i32
    %97 = arith.select %96, %c1_i32_49, %c256_i32_47 : i32
    %98 = arith.remsi %95, %97 : i32
    %c0_i32_50 = arith.constant 0 : i32
    %99 = arith.cmpi ne, %98, %c0_i32_50 : i32
    %c0_i32_51 = arith.constant 0 : i32
    %100 = arith.cmpi slt, %98, %c0_i32_51 : i32
    %c0_i32_52 = arith.constant 0 : i32
    %101 = arith.cmpi slt, %97, %c0_i32_52 : i32
    %102 = arith.xori %100, %101 : i1
    %103 = arith.andi %102, %99 : i1
    %104 = arith.addi %98, %97 : i32
    %105 = arith.select %103, %104, %98 : i32
    %c3 = arith.constant 3 : index
    %c0_53 = arith.constant 0 : index
    %c0_54 = arith.constant 0 : index
    %106 = vector.load %arg2[%c3, %c0_53, %c0_54] : memref<4x2x256xf32, #tpu.memory_space<vmem>>, vector<1x2x256xf32>
    %107 = vector.shape_cast %106 : vector<1x2x256xf32> to vector<2x256xf32>
    %108 = tpu.dynamic_rotate %107 by %105 dim 1 : vector<2x256xf32>, i32 -> vector<2x256xf32>
    %109 = vector.broadcast %94 : i32 to vector<2x256xi32>
    %110 = arith.addi %0, %109 : vector<2x256xi32>
    %c0_i32_55 = arith.constant 0 : i32
    %111 = vector.broadcast %c0_i32_55 : i32 to vector<2x256xi32>
    %112 = arith.cmpi sge, %110, %111 : vector<2x256xi32>
    %c256_i32_56 = arith.constant 256 : i32
    %113 = vector.broadcast %c256_i32_56 : i32 to vector<2x256xi32>
    %114 = arith.cmpi slt, %110, %113 : vector<2x256xi32>
    %115 = arith.andi %112, %114 : vector<2x256xi1>
    %cst_57 = arith.constant 0.000000e+00 : f32
    %116 = vector.broadcast %cst_57 : f32 to vector<2x256xf32>
    %117 = arith.select %115, %108, %116 : vector<2x256xi1>, vector<2x256xf32>
    %c3_58 = arith.constant 3 : index
    %c0_59 = arith.constant 0 : index
    %c0_60 = arith.constant 0 : index
    %118 = vector.load %arg3[%c3_58, %c0_59, %c0_60] : memref<4x2x256xf32, #tpu.memory_space<vmem>>, vector<1x2x256xf32>
    %119 = vector.shape_cast %118 : vector<1x2x256xf32> to vector<2x256xf32>
    %120 = vector.shape_cast %117 : vector<2x256xf32> to vector<1x2x256xf32>
    tpu.vector_store %arg3[%c3_58, %c0_59, %c0_60], %120 {strides = array<i32>} : memref<4x2x256xf32, #tpu.memory_space<vmem>>, vector<1x2x256xf32>,
    return
  }
  func.func @transform_0(%arg0: i32, %arg1: memref<4xi32, #tpu.memory_space<smem>>) -> (i32, i32, i32) {
    %c0_i32 = arith.constant 0 : i32
    %c0_i32_0 = arith.constant 0 : i32
    %c0_i32_1 = arith.constant 0 : i32
    return %arg0, %c0_i32, %c0_i32_0 : i32, i32, i32
  }
  func.func @transform_1(%arg0: i32, %arg1: memref<4xi32, #tpu.memory_space<smem>>) -> (i32, i32, i32) {
    %c0_i32 = arith.constant 0 : i32
    %c0_i32_0 = arith.constant 0 : i32
    %c0_i32_1 = arith.constant 0 : i32
    return %arg0, %c0_i32, %c0_i32_0 : i32, i32, i32
  }
}

</mosaic_0001>

<llo_original>
// kernel: tpu_custom_call.1
$region0: #{tpu_custom_call.1}
  #allocation0 [shape = 'u32[]', space=smem, size = 0x4, offset = 0x4, fixed_abs, tag = 'smem constant byte address 0x4 - core index']
  #allocation1 [shape = 'u32[72,128]{1,0:T(1,128)}', space=vmem, size = 0x9000, scoped, tag = 'internal scratch']
  #allocation2 [shape = 's32[1]{0}', space=sflag, size = 0x4, scoped, tag = 'scoped memory for tpu_custom_call.1']
  #allocation3 [shape = 'u8[512]{0}', space=smem, size = 0x200, scoped, tag = 'prefetched SMEM operand 0']
  %s0 = inlined_call_operand.hbm [shape: s32[4], index: 0, kind: input, shape index: {}]
  %s1 = inlined_call_operand.hbm [shape: f32[4,2,256], index: 1, kind: input, shape index: {}]
  %s2 = inlined_call_operand.hbm [shape: f32[4,2,256], index: 2, kind: output, shape index: {}]
  %s3 = sld [smem:[#allocation0]]
  $region18: #{tpu_custom_call.1} parent=0
    _
  %s5 = ssub.s32 1, %s3
  %s6 = scalar_select 0, %s5, %s3
  %s8 = sshll.u32 %s0, 4
  %s9 = int_to_ptr.hbm [resolvable:$true] %s8
  %11 = dma.hbm_to_smem %s9, 16, [#allocation3], [#allocation2]
  %13 = dma.done [#allocation2], 16
  %14 = sfence
  $region1: #{tpu_custom_call.1} parent=0
    #allocation4 [shape = 'u8[8192]{0}', space=vmem, size = 0x2000, scoped, tag = 'input window, operand 1, single buffered']
    #allocation5 [shape = 's32[1]{0}', space=sflag, size = 0x4, scoped, tag = 'scoped memory for tpu_custom_call.1']
    #allocation6 [shape = 's32[1]{0}', space=sflag, size = 0x4, scoped, tag = 'scoped memory for tpu_custom_call.1']
    #allocation7 [shape = 'u8[8192]{0}', space=vmem, size = 0x2000, scoped, tag = 'output window, operand 0, single buffered']
    %15 = vsyncpa [#allocation5], 0
    %16 = vsyncpa [#allocation6], 0
    // Predicated region
    $region2: #{tpu_custom_call.1} parent=1 // pred_check
      _
    $region3: #{tpu_custom_call.1} parent=1 // pred_check_branch
      %18 = sbr.rel (0) target = $region5
    $region4: #{tpu_custom_call.1} parent=1 // pred_region
      %20 = vsyncadd [#allocation5], 0
      %s21 = sshll.u32 %s1, 4
      %s22 = int_to_ptr.hbm [resolvable:$true] %s21
      %s23 = sshll.u32 [#allocation4], 4
      %s24 = int_to_ptr.vmem [resolvable:$true] %s23
      %29 = dma.hbm_to_vmem [thread:$0]  %s22, 256, %s24, [#allocation5], 64, 64, 4
    $region5: #{tpu_custom_call.1} parent=1 // pred_fallthru
      _
    // Predicated region
    $region6: #{tpu_custom_call.1} parent=1 // pred_check
      _
    $region7: #{tpu_custom_call.1} parent=1 // pred_check_branch
      %31 = sbr.rel (0) target = $region9
    $region8: #{tpu_custom_call.1} parent=1 // pred_region
      %33 = dma.done [#allocation5], 256
    $region9: #{tpu_custom_call.1} parent=1 // pred_fallthru
      _
    %v34 = vlaneseq
    %v35 = vand.u32 %v34, 127
    %v36 = vadd.s32 %v35, 128
    %s37 = smul.u32 0, 4
    %s38 = sld [smem:[#allocation3 + %s37]]
    %s39 = ssub.s32 0, %s38
    %p40 = scmp.lt.s32.totalorder %s39, 0
    %s41 = ssub.s32 0, %s39
    %s42 = scalar_select %p40, %s41, %s39
    %s43 = sand.u32 %s42, 255
    %s44 = ssub.s32 0, %s43
    %s45 = scalar_select %p40, %s44, %s43
    %p46 = scmp.ne.s32.totalorder %s45, 0
    %p47 = scmp.lt.s32.totalorder %s45, 0
    %p48 = pnand %p47, %p46
    %p49 = pneg %p48
    %s50 = sadd.s32 %s45, 256
    %s51 = scalar_select %p49, %s50, %s45
    %v52 = vld [vmem:[#allocation4] sm:$0xf]
    %54 = vst [vmem:[#allocation1] ss:$4 sm:$0xff] %v52
    %v55 = vld.sshfl [vmem:[#allocation1] sm:$0xff pattern:$0x73625140]
    %v56 = vld.sshfl [vmem:[#allocation1 + $0x8] sm:$0xff pattern:$0x73625140]
    %s59 = sand.u32 %s51, 255
    %s60 = sand.u32 %s59, 127
    %s61 = sshrl.u32 %s59, 7
    %62 = vrot.lane.b32.xlu0 %v55, %s60
    %v63 = vpop.permute.xlu0 %62
    %64 = vrot.lane.b32.xlu0 %v56, %s60
    %v65 = vpop.permute.xlu0 %64
    %v66 = vstv %s60
    %vm67 = vcmp.lt.s32.totalorder %v35, %v66
    %v68 = vsel %vm67, %v63, %v65
    %v69 = vsel %vm67, %v65, %v63
    %s70 = sand.u32 %s61, 1
    %v71 = vstv %s70
    %vm72 = vcmp.ne.s32.totalorder %v71, 0
    %v73 = vsel %vm72, %v68, %v69
    %v74 = vsel %vm72, %v69, %v68
    %v75 = vstv %s38
    %v76 = vadd.s32 %v35, %v75
    %v77 = vadd.s32 %v36, %v75
    %vm78 = vcmp.ge.s32.totalorder %v76, 0
    %vm79 = vcmp.ge.s32.totalorder %v77, 0
    %vm80 = vcmp.lt.s32.totalorder %v76, 256
    %vm81 = vcmp.lt.s32.totalorder %v77, 256
    %vm82 = vmand %vm78, %vm80
    %vm83 = vmand %vm79, %vm81
    %v84 = vsel %vm82, %v73, 0.0
    %v85 = vsel %vm83, %v74, 0.0
    %v88 = vrot.slane %v85, 6
    %vm89 = vcmask 1041408
    %v90 = vsel %vm89, %v84, %v88
    %92 = vst [vmem:[#allocation7] sm:$0xf] %v90
    %s93 = sadd.s32 %s37, 1
    %s94 = sld [smem:[#allocation3 + %s93]]
    %s95 = ssub.s32 0, %s94
    %p96 = scmp.lt.s32.totalorder %s95, 0
    %s97 = ssub.s32 0, %s95
    %s98 = scalar_select %p96, %s97, %s95
    %s99 = sand.u32 %s98, 255
    %s100 = ssub.s32 0, %s99
    %s101 = scalar_select %p96, %s100, %s99
    %p102 = scmp.ne.s32.totalorder %s101, 0
    %p103 = scmp.lt.s32.totalorder %s101, 0
    %p104 = pnand %p103, %p102
    %p105 = pneg %p104
    %s106 = sadd.s32 %s101, 256
    %s107 = scalar_select %p105, %s106, %s101
    %s108 = scalar_lea.vmem [#allocation4], 4
    %v109 = vld [vmem:[%s108] sm:$0xf]
    %111 = vst [vmem:[#allocation1] ss:$4 sm:$0xff] %v109
    %v112 = vld.sshfl [vmem:[#allocation1] sm:$0xff pattern:$0x73625140]
    %v113 = vld.sshfl [vmem:[#allocation1 + $0x8] sm:$0xff pattern:$0x73625140]
    %s116 = sand.u32 %s107, 255
    %s117 = sand.u32 %s116, 127
    %s118 = sshrl.u32 %s116, 7
    %119 = vrot.lane.b32.xlu0 %v112, %s117
    %v120 = vpop.permute.xlu0 %119
    %121 = vrot.lane.b32.xlu0 %v113, %s117
    %v122 = vpop.permute.xlu0 %121
    %v123 = vstv %s117
    %vm124 = vcmp.lt.s32.totalorder %v35, %v123
    %v125 = vsel %vm124, %v120, %v122
    %v126 = vsel %vm124, %v122, %v120
    %s127 = sand.u32 %s118, 1
    %v128 = vstv %s127
    %vm129 = vcmp.ne.s32.totalorder %v128, 0
    %v130 = vsel %vm129, %v125, %v126
    %v131 = vsel %vm129, %v126, %v125
    %v132 = vstv %s94
    %v133 = vadd.s32 %v35, %v132
    %v134 = vadd.s32 %v36, %v132
    %vm135 = vcmp.ge.s32.totalorder %v133, 0
    %vm136 = vcmp.ge.s32.totalorder %v134, 0
    %vm137 = vcmp.lt.s32.totalorder %v133, 256
    %vm138 = vcmp.lt.s32.totalorder %v134, 256
    %vm139 = vmand %vm135, %vm137
    %vm140 = vmand %vm136, %vm138
    %v141 = vsel %vm139, %v130, 0.0
    %v142 = vsel %vm140, %v131, 0.0
    %v145 = vrot.slane %v142, 6
    %v146 = vsel %vm89, %v141, %v145
    %s148 = scalar_lea.vmem [#allocation7], 4
    %149 = vst [vmem:[%s148] sm:$0xf] %v146
    %s150 = sadd.s32 %s37, 2
    %s151 = sld [smem:[#allocation3 + %s150]]
    %s152 = ssub.s32 0, %s151
    %p153 = scmp.lt.s32.totalorder %s152, 0
    %s154 = ssub.s32 0, %s152
    %s155 = scalar_select %p153, %s154, %s152
    %s156 = sand.u32 %s155, 255
    %s157 = ssub.s32 0, %s156
    %s158 = scalar_select %p153, %s157, %s156
    %p159 = scmp.ne.s32.totalorder %s158, 0
    %p160 = scmp.lt.s32.totalorder %s158, 0
    %p161 = pnand %p160, %p159
    %p162 = pneg %p161
    %s163 = sadd.s32 %s158, 256
    %s164 = scalar_select %p162, %s163, %s158
    %s165 = scalar_lea.vmem [#allocation4], 8
    %v166 = vld [vmem:[%s165] sm:$0xf]
    %168 = vst [vmem:[#allocation1] ss:$4 sm:$0xff] %v166
    %v169 = vld.sshfl [vmem:[#allocation1] sm:$0xff pattern:$0x73625140]
    %v170 = vld.sshfl [vmem:[#allocation1 + $0x8] sm:$0xff pattern:$0x73625140]
    %s173 = sand.u32 %s164, 255
    %s174 = sand.u32 %s173, 127
    %s175 = sshrl.u32 %s173, 7
    %176 = vrot.lane.b32.xlu0 %v169, %s174
    %v177 = vpop.permute.xlu0 %176
    %178 = vrot.lane.b32.xlu0 %v170, %s174
    %v179 = vpop.permute.xlu0 %178
    %v180 = vstv %s174
    %vm181 = vcmp.lt.s32.totalorder %v35, %v180
    %v182 = vsel %vm181, %v177, %v179
    %v183 = vsel %vm181, %v179, %v177
    %s184 = sand.u32 %s175, 1
    %v185 = vstv %s184
    %vm186 = vcmp.ne.s32.totalorder %v185, 0
    %v187 = vsel %vm186, %v182, %v183
    %v188 = vsel %vm186, %v183, %v182
    %v189 = vstv %s151
    %v190 = vadd.s32 %v35, %v189
    %v191 = vadd.s32 %v36, %v189
    %vm192 = vcmp.ge.s32.totalorder %v190, 0
    %vm193 = vcmp.ge.s32.totalorder %v191, 0
    %vm194 = vcmp.lt.s32.totalorder %v190, 256
    %vm195 = vcmp.lt.s32.totalorder %v191, 256
    %vm196 = vmand %vm192, %vm194
    %vm197 = vmand %vm193, %vm195
    %v198 = vsel %vm196, %v187, 0.0
    %v199 = vsel %vm197, %v188, 0.0
    %v202 = vrot.slane %v199, 6
    %v203 = vsel %vm89, %v198, %v202
    %s205 = scalar_lea.vmem [#allocation7], 8
    %206 = vst [vmem:[%s205] sm:$0xf] %v203
    %s207 = sadd.s32 %s37, 3
    %s208 = sld [smem:[#allocation3 + %s207]]
    %s209 = ssub.s32 0, %s208
    %p210 = scmp.lt.s32.totalorder %s209, 0
    %s211 = ssub.s32 0, %s209
    %s212 = scalar_select %p210, %s211, %s209
    %s213 = sand.u32 %s212, 255
    %s214 = ssub.s32 0, %s213
    %s215 = scalar_select %p210, %s214, %s213
    %p216 = scmp.ne.s32.totalorder %s215, 0
    %p217 = scmp.lt.s32.totalorder %s215, 0
    %p218 = pnand %p217, %p216
    %p219 = pneg %p218
    %s220 = sadd.s32 %s215, 256
    %s221 = scalar_select %p219, %s220, %s215
    %s222 = scalar_lea.vmem [#allocation4], 12
    %v223 = vld [vmem:[%s222] sm:$0xf]
    %225 = vst [vmem:[#allocation1] ss:$4 sm:$0xff] %v223
    %v226 = vld.sshfl [vmem:[#allocation1] sm:$0xff pattern:$0x73625140]
    %v227 = vld.sshfl [vmem:[#allocation1 + $0x8] sm:$0xff pattern:$0x73625140]
    %s230 = sand.u32 %s221, 255
    %s231 = sand.u32 %s230, 127
    %s232 = sshrl.u32 %s230, 7
    %233 = vrot.lane.b32.xlu0 %v226, %s231
    %v234 = vpop.permute.xlu0 %233
    %235 = vrot.lane.b32.xlu0 %v227, %s231
    %v236 = vpop.permute.xlu0 %235
    %v237 = vstv %s231
    %vm238 = vcmp.lt.s32.totalorder %v35, %v237
    %v239 = vsel %vm238, %v234, %v236
    %v240 = vsel %vm238, %v236, %v234
    %s241 = sand.u32 %s232, 1
    %v242 = vstv %s241
    %vm243 = vcmp.ne.s32.totalorder %v242, 0
    %v244 = vsel %vm243, %v239, %v240
    %v245 = vsel %vm243, %v240, %v239
    %v246 = vstv %s208
    %v247 = vadd.s32 %v35, %v246
    %v248 = vadd.s32 %v36, %v246
    %vm249 = vcmp.ge.s32.totalorder %v247, 0
    %vm250 = vcmp.ge.s32.totalorder %v248, 0
    %vm251 = vcmp.lt.s32.totalorder %v247, 256
    %vm252 = vcmp.lt.s32.totalorder %v248, 256
    %vm253 = vmand %vm249, %vm251
    %vm254 = vmand %vm250, %vm252
    %v255 = vsel %vm253, %v244, 0.0
    %v256 = vsel %vm254, %v245, 0.0
    %v259 = vrot.slane %v256, 6
    %v260 = vsel %vm89, %v255, %v259
    %s262 = scalar_lea.vmem [#allocation7], 12
    %263 = vst [vmem:[%s262] sm:$0xf] %v260
    // Predicated region
    $region10: #{tpu_custom_call.1} parent=1 // pred_check
      _
    $region11: #{tpu_custom_call.1} parent=1 // pred_check_branch
      %265 = sbr.rel (0) target = $region13
    $region12: #{tpu_custom_call.1} parent=1 // pred_region
      %267 = vsyncadd [#allocation6], 0
      %s268 = sshll.u32 [#allocation7], 4
      %s269 = int_to_ptr.vmem [resolvable:$true] %s268
      %s270 = sshll.u32 %s2, 4
      %s271 = int_to_ptr.hbm [resolvable:$true] %s270
      %276 = dma.vmem_to_hbm [thread:$0]  %s269, 256, %s271, [#allocation6], 64, 64, 4
    $region13: #{tpu_custom_call.1} parent=1 // pred_fallthru
      _
    // Predicated region
    $region14: #{tpu_custom_call.1} parent=1 // pred_check
      _
    $region15: #{tpu_custom_call.1} parent=1 // pred_check_branch
      %278 = sbr.rel (0) target = $region17
    $region16: #{tpu_custom_call.1} parent=1 // pred_region
      %280 = dma.done [#allocation6], 256
    $region17: #{tpu_custom_call.1} parent=1 // pred_fallthru
      _
    %281 = vsyncpa [#allocation5], 1
    %282 = vsyncpa [#allocation6], 1

</llo_original>
